<compile_context>
chip_gen: v7x
topology: tpu7x:2x2x1
jax: 0.10.0
libtpu: 0.0.40
codegen_flags: <defaults>
</compile_context>

<pallas_src>
import numpy as np

import jax
import jax.numpy as jnp
from jax.experimental import pallas as pl
from jax.experimental.pallas import tpu as pltpu


_LANE = 128        # lane padding for intermediate (hidden) widths -> dense MXU tiles
_BATCH_GRAN = 16   # bf16 sublane packing -> 16-row batch-tile granularity
_N_CHUNK = 256     # per-layer N chunk (matches v6e/v7x MXU width)


def _round_up(x: int, m: int) -> int:
    return ((x + m - 1) // m) * m


def prepare_ffnetwork_params(params):
    """One-time prep: pad hidden widths to 128 lanes, zero-fill, cast W to bf16.

    `params` is a list of (W, b) with W: (in, out) f32 and b: (out,) f32 in layer
    order. Returns a list of (W_bf16_padded, b_f32_padded) ready for
    ffnetwork_forward. The first layer's input width and the final layer's output
    width are left unpadded so the kernel reads x and writes the output directly.
    """
    num_layers = len(params)
    prepped = []
    in_dim = params[0][0].shape[0]                      # state_dim (unpadded)
    for i, (w, b) in enumerate(params):
        out_raw = w.shape[1]
        last = i == num_layers - 1
        out_dim = out_raw if last else _round_up(out_raw, _LANE)
        w_p = (jnp.zeros((in_dim, out_dim), jnp.bfloat16)
               .at[: w.shape[0], :out_raw].set(w.astype(jnp.bfloat16)))
        b_p = (jnp.zeros((1, out_dim), jnp.float32)
               .at[0, :out_raw].set(b.astype(jnp.float32)))
        prepped.append((w_p, b_p))
        in_dim = out_dim
    return prepped


def _make_ff_kernel(num_layers: int, n_chunk: int):
    """Fused [Linear(+ReLU)] x num_layers; bf16 MXU inputs, f32 accumulate."""

    def kernel(*refs):
        # refs = (x, w0, b0, ..., w{L-1}, b{L-1}, out, h_scratch)
        x_ref = refs[0]
        out_ref = refs[1 + 2 * num_layers]
        h_scr = refs[2 + 2 * num_layers]

        h = x_ref[...].astype(jnp.bfloat16)             # cast in vregs; no wrapper pad
        for i in range(num_layers):
            w_ref = refs[1 + 2 * i]                     # (in, out) bf16, VMEM-resident
            b_ref = refs[2 + 2 * i]                     # (1, out) f32,  VMEM-resident
            out_p = w_ref.shape[1]
            last = i == num_layers - 1

            if not last and out_p <= n_chunk:
                # Narrow layer: keep the activation in vregs.
                acc = jnp.dot(h, w_ref[...], preferred_element_type=jnp.float32)
                acc = acc + b_ref[...]
                h = jnp.maximum(acc.astype(jnp.bfloat16), 0.0)       # ReLU
            else:
                # Wide layer (or the final layer): chunk along N so the f32
                # accumulator stays vreg-sized; intermediate chunks land in a bf16
                # VMEM scratch, final-layer chunks go straight to out_ref.
                for n0 in range(0, out_p, n_chunk):
                    cn = min(n_chunk, out_p - n0)
                    acc = jnp.dot(h, w_ref[:, n0:n0 + cn],
                                  preferred_element_type=jnp.float32)
                    acc = acc + b_ref[:, n0:n0 + cn]
                    if last:
                        out_ref[:, n0:n0 + cn] = acc.astype(out_ref.dtype)
                    else:
                        h_scr[:, n0:n0 + cn] = jnp.maximum(
                            acc.astype(jnp.bfloat16), 0.0)
                if not last:
                    h = h_scr[:, :out_p]

    return kernel


def _vmem_capacity_bytes() -> int:
    try:
        cap = getattr(pltpu.get_tpu_info(), "vmem_capacity_bytes", None)
        if cap:
            return int(cap)
    except Exception:
        pass
    return 64 << 20        # conservative fallback (v7x per-TensorCore VMEM)


def ffnetwork_forward(x, prepped_params, *, block_batch: int = 512,
                      n_chunk: int = _N_CHUNK, out_dtype=jnp.float32):
    """FFNetwork forward pass. `prepped_params` from prepare_ffnetwork_params()."""
    batch = x.shape[0]
    x_flat = x.reshape(batch, -1)                       # nn.Flatten (row-major)
    state_dim = x_flat.shape[1]
    num_layers = len(prepped_params)
    assert prepped_params[0][0].shape[0] == state_dim, "params do not match x"
    feature_dim = prepped_params[-1][0].shape[1]

    mids = [w.shape[1] for w, _ in prepped_params[:-1]]
    max_mid = max(mids) if mids else _LANE
    weight_bytes = sum(w.size * w.dtype.itemsize + b.size * b.dtype.itemsize
                       for w, b in prepped_params)
    x_isz = x_flat.dtype.itemsize
    out_isz = np.dtype(out_dtype).itemsize

    # ---- generation-aware VMEM budget (v5e/v6e: ~128 MiB, v7x: 64 MiB/TC) ----
    vmem_cap = _vmem_capacity_bytes()
    vmem_limit = int(vmem_cap * 0.85)
    budget = vmem_limit - (4 << 20)                     # headroom for Mosaic scratch

    def _vmem_need(tb_: int) -> int:
        x_tile = tb_ * state_dim * x_isz * 2            # double-buffered input tiles
        out_tile = tb_ * feature_dim * out_isz * 2      # double-buffered output tiles
        scr = tb_ * max_mid * 2                         # bf16 activation scratch
        live = tb_ * max(mids + [state_dim, feature_dim]) * 4 * 2   # f32 accumulators
        return weight_bytes + x_tile + out_tile + scr + live

    # ---- batch-tile: 16-row granularity, fit VMEM, >=2 tiles for v7x, balanced ----
    tb = min(block_batch, batch)
    if tb < batch:
        tb = max(_BATCH_GRAN, (tb // _BATCH_GRAN) * _BATCH_GRAN)
    while _vmem_need(tb) > budget and tb > _BATCH_GRAN:
        tb = max(_BATCH_GRAN, ((tb // 2) // _BATCH_GRAN) * _BATCH_GRAN)
    # TODO(synk): if resident weights alone exceed the VMEM budget, stream them from
    # HBM (memory_space=pl.ANY + manual make_async_copy) instead of relying on tb.
    if batch >= 2 * _BATCH_GRAN and pl.cdiv(batch, tb) < 2:
        tb = _round_up(pl.cdiv(batch, 2), _BATCH_GRAN)   # both v7x TCs get work
    if tb < batch:
        nt = pl.cdiv(batch, tb)
        tb = _round_up(pl.cdiv(batch, nt), _BATCH_GRAN)  # avoid nearly-empty tail tile
    tb = max(1, min(tb, batch))
    grid = (pl.cdiv(batch, tb),)

    # ---- specs: x/out batch-tiled + pipelined; weights/biases VMEM-resident ----
    in_specs = [pl.BlockSpec((tb, state_dim), lambda i: (i, 0))]
    kernel_inputs = [x_flat]
    for w_p, b_p in prepped_params:
        in_specs.append(pl.BlockSpec(memory_space=pltpu.MemorySpace.VMEM))
        in_specs.append(pl.BlockSpec(memory_space=pltpu.MemorySpace.VMEM))
        kernel_inputs.append(w_p)
        kernel_inputs.append(b_p)
    out_spec = pl.BlockSpec((tb, feature_dim), lambda i: (i, 0))

    dims = [state_dim] + [w.shape[1] for w, _ in prepped_params]
    flops = 2 * batch * sum(dims[i] * dims[i + 1] for i in range(num_layers))
    bytes_accessed = (x_flat.size * x_isz + weight_bytes
                      + batch * feature_dim * out_isz)

    return pl.pallas_call(
        _make_ff_kernel(num_layers, n_chunk),
        grid=grid,
        in_specs=in_specs,
        out_specs=out_spec,
        out_shape=jax.ShapeDtypeStruct((batch, feature_dim), out_dtype),
        scratch_shapes=[pltpu.VMEM((tb, max_mid), jnp.bfloat16)],
        compiler_params=pltpu.CompilerParams(
            dimension_semantics=("parallel",),           # shards tiles across v7x TCs
            vmem_limit_bytes=vmem_limit,
        ),
        cost_estimate=pl.CostEstimate(
            flops=flops, transcendentals=0, bytes_accessed=bytes_accessed),
    )(*kernel_inputs)


def init_ffnetwork_params(key, state_dim, feature_dim, hidden_dim, num_hidden_layers):
    """Deterministic init mirroring torch.nn.Linear default (U[-1/sqrt(fan_in), +])."""
    dims = [state_dim] + [hidden_dim] * (1 + num_hidden_layers) + [feature_dim]
    params = []
    for i in range(len(dims) - 1):
        fan_in, fan_out = dims[i], dims[i + 1]
        key, kw, kb = jax.random.split(key, 3)
        bound = 1.0 / jnp.sqrt(fan_in)
        w = jax.random.uniform(kw, (fan_in, fan_out), jnp.float32, -bound, bound)
        b = jax.random.uniform(kb, (fan_out,), jnp.float32, -bound, bound)
        params.append((w, b))
    return params


def _reference(x, params):
    h = x.reshape(x.shape[0], -1)
    for i, (w, b) in enumerate(params):
        h = h @ w + b
        if i < len(params) - 1:
            h = jnp.maximum(h, 0.0)
    return h


if __name__ == "__main__":
    key = jax.random.PRNGKey(0)
    k1, k2, k3, k4 = jax.random.split(key, 4)

    # Case 1: small shapes consistent with the module's forward.
    # x: (batch=2, 4, 16) -> flatten -> state_dim=64; hidden=32; 2 hidden layers; feat=8
    x1 = jax.random.normal(k1, (2, 4, 16), jnp.float32)
    params1 = init_ffnetwork_params(k2, 64, 8, 32, 2)
    prepped1 = prepare_ffnetwork_params(params1)        # one-time pad/cast (no per-call cost)
    out1 = jax.block_until_ready(jax.jit(ffnetwork_forward)(x1, prepped1))
    ref1 = _reference(x1, params1)
    assert out1.shape == (2, 8)
    # bf16 MXU operands -> loose tolerance vs the f32 reference.
    assert jnp.allclose(out1, ref1, atol=5e-2, rtol=5e-2), \
        float(jnp.max(jnp.abs(out1 - ref1)))

    # Case 2: exercises multi-tile grid (masked tail tile) and the N-chunked path.
    x2 = jax.random.normal(k3, (37, 4, 16), jnp.float32)
    params2 = init_ffnetwork_params(k4, 64, 8, 320, 1)
    prepped2 = prepare_ffnetwork_params(params2)
    out2 = jax.block_until_ready(jax.jit(ffnetwork_forward)(x2, prepped2))
    ref2 = _reference(x2, params2)
    assert out2.shape == (37, 8)
    assert jnp.allclose(out2, ref2, atol=5e-2, rtol=5e-2), \
        float(jnp.max(jnp.abs(out2 - ref2)))

    print("KERNEL_OK")
</pallas_src>

<mosaic_0001>
module attributes {stable_mosaic.version = 11 : i64} {
  func.func @kernel(%arg0: i32, %arg1: memref<2x64xf32, #tpu.memory_space<vmem>>, %arg2: memref<64x128xbf16, #tpu.memory_space<vmem>>, %arg3: memref<1x128xf32, #tpu.memory_space<vmem>>, %arg4: memref<128x128xbf16, #tpu.memory_space<vmem>>, %arg5: memref<1x128xf32, #tpu.memory_space<vmem>>, %arg6: memref<128x128xbf16, #tpu.memory_space<vmem>>, %arg7: memref<1x128xf32, #tpu.memory_space<vmem>>, %arg8: memref<128x8xbf16, #tpu.memory_space<vmem>>, %arg9: memref<1x8xf32, #tpu.memory_space<vmem>>, %arg10: memref<2x8xf32, #tpu.memory_space<vmem>>, %arg11: memref<2x128xbf16, #tpu.memory_space<vmem>>) attributes {dimension_semantics = [#tpu.dimension_semantics<parallel>], iteration_bounds = array<i64: 1>, scalar_prefetch = 0 : i64, scratch_operands = 1 : i64, tpu.core_type = #tpu.core_type<tc>, window_params = [{transform_indices = @transform_0, window_bounds = array<i64: 2, 64>}, {pipeline_mode = #tpu.pipeline_mode<synchronous>, transform_indices = @transform_1, window_bounds = array<i64: 64, 128>}, {pipeline_mode = #tpu.pipeline_mode<synchronous>, transform_indices = @transform_2, window_bounds = array<i64: 1, 128>}, {pipeline_mode = #tpu.pipeline_mode<synchronous>, transform_indices = @transform_3, window_bounds = array<i64: 128, 128>}, {pipeline_mode = #tpu.pipeline_mode<synchronous>, transform_indices = @transform_4, window_bounds = array<i64: 1, 128>}, {pipeline_mode = #tpu.pipeline_mode<synchronous>, transform_indices = @transform_5, window_bounds = array<i64: 128, 128>}, {pipeline_mode = #tpu.pipeline_mode<synchronous>, transform_indices = @transform_6, window_bounds = array<i64: 1, 128>}, {pipeline_mode = #tpu.pipeline_mode<synchronous>, transform_indices = @transform_7, window_bounds = array<i64: 128, 8>}, {pipeline_mode = #tpu.pipeline_mode<synchronous>, transform_indices = @transform_8, window_bounds = array<i64: 1, 8>}, {transform_indices = @transform_9, window_bounds = array<i64: 2, 8>}]} {
    %c0 = arith.constant 0 : index
    %c0_0 = arith.constant 0 : index
    %0 = vector.load %arg1[%c0, %c0_0] : memref<2x64xf32, #tpu.memory_space<vmem>>, vector<2x64xf32>
    %1 = arith.truncf %0 : vector<2x64xf32> to vector<2x64xbf16>
    %c0_1 = arith.constant 0 : index
    %c0_2 = arith.constant 0 : index
    %2 = vector.load %arg2[%c0_1, %c0_2] : memref<64x128xbf16, #tpu.memory_space<vmem>>, vector<64x128xbf16>
    %cst = arith.constant dense<0.000000e+00> : vector<2x128xf32>
    %3 = tpu.matmul %1, %2, %cst {dimension_numbers = #tpu.dot_dimension_numbers<[1], [0], [0], [1], [0, 0, 1, 1], [], []>} : vector<2x64xbf16>, vector<64x128xbf16>, vector<2x128xf32> -> vector<2x128xf32>
    %c0_3 = arith.constant 0 : index
    %c0_4 = arith.constant 0 : index
    %4 = vector.load %arg3[%c0_3, %c0_4] : memref<1x128xf32, #tpu.memory_space<vmem>>, vector<1x128xf32>
    %5 = vector.broadcast %4 : vector<1x128xf32> to vector<2x128xf32>
    %6 = arith.addf %3, %5 : vector<2x128xf32>
    %7 = arith.truncf %6 : vector<2x128xf32> to vector<2x128xbf16>
    %cst_5 = arith.constant 0.000000e+00 : bf16
    %8 = vector.broadcast %cst_5 : bf16 to vector<2x128xbf16>
    %9 = arith.maximumf %7, %8 : vector<2x128xbf16>
    %c0_6 = arith.constant 0 : index
    %c0_7 = arith.constant 0 : index
    %10 = vector.load %arg4[%c0_6, %c0_7] : memref<128x128xbf16, #tpu.memory_space<vmem>>, vector<128x128xbf16>
    %cst_8 = arith.constant dense<0.000000e+00> : vector<2x128xf32>
    %11 = tpu.matmul %9, %10, %cst_8 {dimension_numbers = #tpu.dot_dimension_numbers<[1], [0], [0], [1], [0, 0, 1, 1], [], []>} : vector<2x128xbf16>, vector<128x128xbf16>, vector<2x128xf32> -> vector<2x128xf32>
    %c0_9 = arith.constant 0 : index
    %c0_10 = arith.constant 0 : index
    %12 = vector.load %arg5[%c0_9, %c0_10] : memref<1x128xf32, #tpu.memory_space<vmem>>, vector<1x128xf32>
    %13 = vector.broadcast %12 : vector<1x128xf32> to vector<2x128xf32>
    %14 = arith.addf %11, %13 : vector<2x128xf32>
    %15 = arith.truncf %14 : vector<2x128xf32> to vector<2x128xbf16>
    %cst_11 = arith.constant 0.000000e+00 : bf16
    %16 = vector.broadcast %cst_11 : bf16 to vector<2x128xbf16>
    %17 = arith.maximumf %15, %16 : vector<2x128xbf16>
    %c0_12 = arith.constant 0 : index
    %c0_13 = arith.constant 0 : index
    %18 = vector.load %arg6[%c0_12, %c0_13] : memref<128x128xbf16, #tpu.memory_space<vmem>>, vector<128x128xbf16>
    %cst_14 = arith.constant dense<0.000000e+00> : vector<2x128xf32>
    %19 = tpu.matmul %17, %18, %cst_14 {dimension_numbers = #tpu.dot_dimension_numbers<[1], [0], [0], [1], [0, 0, 1, 1], [], []>} : vector<2x128xbf16>, vector<128x128xbf16>, vector<2x128xf32> -> vector<2x128xf32>
    %c0_15 = arith.constant 0 : index
    %c0_16 = arith.constant 0 : index
    %20 = vector.load %arg7[%c0_15, %c0_16] : memref<1x128xf32, #tpu.memory_space<vmem>>, vector<1x128xf32>
    %21 = vector.broadcast %20 : vector<1x128xf32> to vector<2x128xf32>
    %22 = arith.addf %19, %21 : vector<2x128xf32>
    %23 = arith.truncf %22 : vector<2x128xf32> to vector<2x128xbf16>
    %cst_17 = arith.constant 0.000000e+00 : bf16
    %24 = vector.broadcast %cst_17 : bf16 to vector<2x128xbf16>
    %25 = arith.maximumf %23, %24 : vector<2x128xbf16>
    %c0_18 = arith.constant 0 : index
    %c0_19 = arith.constant 0 : index
    %26 = vector.load %arg8[%c0_18, %c0_19] : memref<128x8xbf16, #tpu.memory_space<vmem>>, vector<128x8xbf16>
    %cst_20 = arith.constant dense<0.000000e+00> : vector<2x8xf32>
    %27 = tpu.matmul %25, %26, %cst_20 {dimension_numbers = #tpu.dot_dimension_numbers<[1], [0], [0], [1], [0, 0, 1, 1], [], []>} : vector<2x128xbf16>, vector<128x8xbf16>, vector<2x8xf32> -> vector<2x8xf32>
    %c0_21 = arith.constant 0 : index
    %c0_22 = arith.constant 0 : index
    %28 = vector.load %arg9[%c0_21, %c0_22] : memref<1x8xf32, #tpu.memory_space<vmem>>, vector<1x8xf32>
    %29 = vector.broadcast %28 : vector<1x8xf32> to vector<2x8xf32>
    %30 = arith.addf %27, %29 : vector<2x8xf32>
    %c0_23 = arith.constant 0 : index
    %c0_24 = arith.constant 0 : index
    %31 = vector.load %arg10[%c0_23, %c0_24] : memref<2x8xf32, #tpu.memory_space<vmem>>, vector<2x8xf32>
    tpu.vector_store %arg10[%c0_23, %c0_24], %30 {strides = array<i32>} : memref<2x8xf32, #tpu.memory_space<vmem>>, vector<2x8xf32>,
    return
  }
  func.func @transform_0(%arg0: i32) -> (i32, i32) {
    %c0_i32 = arith.constant 0 : i32
    %c0_i32_0 = arith.constant 0 : i32
    return %arg0, %c0_i32 : i32, i32
  }
  func.func @transform_1(%arg0: i32) -> (i32, i32) {
    %c0_i32 = arith.constant 0 : i32
    %c0_i32_0 = arith.constant 0 : i32
    %c0_i32_1 = arith.constant 0 : i32
    return %c0_i32, %c0_i32_0 : i32, i32
  }
  func.func @transform_2(%arg0: i32) -> (i32, i32) {
    %c0_i32 = arith.constant 0 : i32
    %c0_i32_0 = arith.constant 0 : i32
    %c0_i32_1 = arith.constant 0 : i32
    return %c0_i32, %c0_i32_0 : i32, i32
  }
  func.func @transform_3(%arg0: i32) -> (i32, i32) {
    %c0_i32 = arith.constant 0 : i32
    %c0_i32_0 = arith.constant 0 : i32
    %c0_i32_1 = arith.constant 0 : i32
    return %c0_i32, %c0_i32_0 : i32, i32
  }
  func.func @transform_4(%arg0: i32) -> (i32, i32) {
    %c0_i32 = arith.constant 0 : i32
    %c0_i32_0 = arith.constant 0 : i32
    %c0_i32_1 = arith.constant 0 : i32
    return %c0_i32, %c0_i32_0 : i32, i32
  }
  func.func @transform_5(%arg0: i32) -> (i32, i32) {
    %c0_i32 = arith.constant 0 : i32
    %c0_i32_0 = arith.constant 0 : i32
    %c0_i32_1 = arith.constant 0 : i32
    return %c0_i32, %c0_i32_0 : i32, i32
  }
  func.func @transform_6(%arg0: i32) -> (i32, i32) {
    %c0_i32 = arith.constant 0 : i32
    %c0_i32_0 = arith.constant 0 : i32
    %c0_i32_1 = arith.constant 0 : i32
    return %c0_i32, %c0_i32_0 : i32, i32
  }
  func.func @transform_7(%arg0: i32) -> (i32, i32) {
    %c0_i32 = arith.constant 0 : i32
    %c0_i32_0 = arith.constant 0 : i32
    %c0_i32_1 = arith.constant 0 : i32
    return %c0_i32, %c0_i32_0 : i32, i32
  }
  func.func @transform_8(%arg0: i32) -> (i32, i32) {
    %c0_i32 = arith.constant 0 : i32
    %c0_i32_0 = arith.constant 0 : i32
    %c0_i32_1 = arith.constant 0 : i32
    return %c0_i32, %c0_i32_0 : i32, i32
  }
  func.func @transform_9(%arg0: i32) -> (i32, i32) {
    %c0_i32 = arith.constant 0 : i32
    %c0_i32_0 = arith.constant 0 : i32
    return %arg0, %c0_i32 : i32, i32
  }
}

</mosaic_0001>

<llo_original>
// kernel: ffnetwork_forward.1
$region0: #{ffnetwork_forward.1}
  #allocation0 [shape = 'u32[]', space=smem, size = 0x4, offset = 0x4, fixed_abs, tag = 'smem constant byte address 0x4 - core index']
  #allocation1 [shape = 'u32[144,128]{1,0:T(1,128)}', space=vmem, size = 0x12000, scoped, tag = 'internal scratch']
  #allocation2 [shape = 'bf16[2,128]{1,0:T(2,128)(2,1)}', space=vmem, size = 0x200, scoped, tag = 'scratch operand']
  %s0 = inlined_call_operand.vmem [shape: f32[2,64], index: 0, kind: input, shape index: {}]
  %s1 = inlined_call_operand.hbm [shape: bf16[64,128], index: 1, kind: input, shape index: {}]
  %s2 = inlined_call_operand.vmem [shape: f32[1,128], index: 2, kind: input, shape index: {}]
  %s3 = inlined_call_operand.vmem [shape: bf16[128,128], index: 3, kind: input, shape index: {}]
  %s4 = inlined_call_operand.vmem [shape: f32[1,128], index: 4, kind: input, shape index: {}]
  %s5 = inlined_call_operand.hbm [shape: bf16[128,128], index: 5, kind: input, shape index: {}]
  %s6 = inlined_call_operand.vmem [shape: f32[1,128], index: 6, kind: input, shape index: {}]
  %s7 = inlined_call_operand.vmem [shape: bf16[128,8], index: 7, kind: input, shape index: {}]
  %s8 = inlined_call_operand.vmem [shape: f32[1,8], index: 8, kind: input, shape index: {}]
  %s9 = inlined_call_operand.hbm [shape: f32[2,8], index: 9, kind: output, shape index: {}]
  %s10 = sld [smem:[#allocation0]]
  $region54: #{ffnetwork_forward.1} parent=0
    _
  %s12 = ssub.s32 1, %s10
  %s13 = scalar_select 0, %s12, %s10
  $region1: #{ffnetwork_forward.1} parent=0
    #allocation3 [shape = 'u8[16384]{0}', space=vmem, size = 0x4000, scoped, tag = 'input window, operand 1, single buffered']
    #allocation4 [shape = 's32[1]{0}', space=sflag, size = 0x4, scoped, tag = 'scoped memory for ffnetwork_forward.1']
    #allocation5 [shape = 's32[1]{0}', space=sflag, size = 0x4, scoped, tag = 'scoped memory for ffnetwork_forward.1']
    #allocation6 [shape = 'u8[32768]{0}', space=vmem, size = 0x8000, scoped, tag = 'input window, operand 5, single buffered']
    #allocation7 [shape = 's32[1]{0}', space=sflag, size = 0x4, scoped, tag = 'scoped memory for ffnetwork_forward.1']
    #allocation8 [shape = 'u8[1024]{0}', space=vmem, size = 0x400, scoped, tag = 'output window, operand 0, single buffered']
    %14 = vsyncpa [#allocation4], 0
    %15 = vsyncpa [#allocation7], 0
    %16 = vsyncpa [#allocation5], 0
    // Predicated region
    $region2: #{ffnetwork_forward.1} parent=1 // pred_check
      _
    $region3: #{ffnetwork_forward.1} parent=1 // pred_check_branch
      %18 = sbr.rel (0) target = $region5
    $region4: #{ffnetwork_forward.1} parent=1 // pred_region
      _
    $region5: #{ffnetwork_forward.1} parent=1 // pred_fallthru
      _
    // Predicated region
    $region6: #{ffnetwork_forward.1} parent=1 // pred_check
      _
    $region7: #{ffnetwork_forward.1} parent=1 // pred_check_branch
      %20 = sbr.rel (0) target = $region9
    $region8: #{ffnetwork_forward.1} parent=1 // pred_region
      %s22 = ssub.s32 512, 512
      %23 = vsyncadd [#allocation4], %s22
      %s24 = sshll.u32 [#allocation3], 4
      %s25 = int_to_ptr.vmem [resolvable:$true] %s24
      %30 = dma.hbm_to_vmem [thread:$0]  %s1, 512, %s25, [#allocation4], 64, 64, 4
    $region9: #{ffnetwork_forward.1} parent=1 // pred_fallthru
      _
    // Predicated region
    $region10: #{ffnetwork_forward.1} parent=1 // pred_check
      _
    $region11: #{ffnetwork_forward.1} parent=1 // pred_check_branch
      %32 = sbr.rel (0) target = $region13
    $region12: #{ffnetwork_forward.1} parent=1 // pred_region
      _
    $region13: #{ffnetwork_forward.1} parent=1 // pred_fallthru
      _
    // Predicated region
    $region14: #{ffnetwork_forward.1} parent=1 // pred_check
      _
    $region15: #{ffnetwork_forward.1} parent=1 // pred_check_branch
      %34 = sbr.rel (0) target = $region17
    $region16: #{ffnetwork_forward.1} parent=1 // pred_region
      _
    $region17: #{ffnetwork_forward.1} parent=1 // pred_fallthru
      _
    // Predicated region
    $region18: #{ffnetwork_forward.1} parent=1 // pred_check
      _
    $region19: #{ffnetwork_forward.1} parent=1 // pred_check_branch
      %36 = sbr.rel (0) target = $region21
    $region20: #{ffnetwork_forward.1} parent=1 // pred_region
      _
    $region21: #{ffnetwork_forward.1} parent=1 // pred_fallthru
      _
    // Predicated region
    $region22: #{ffnetwork_forward.1} parent=1 // pred_check
      _
    $region23: #{ffnetwork_forward.1} parent=1 // pred_check_branch
      %38 = sbr.rel (0) target = $region25
    $region24: #{ffnetwork_forward.1} parent=1 // pred_region
      %s40 = ssub.s32 1024, 1024
      %41 = vsyncadd [#allocation7], %s40
      %s42 = sshll.u32 [#allocation6], 4
      %s43 = int_to_ptr.vmem [resolvable:$true] %s42
      %48 = dma.hbm_to_vmem [thread:$0]  %s5, 1024, %s43, [#allocation7], 64, 64, 4
    $region25: #{ffnetwork_forward.1} parent=1 // pred_fallthru
      _
    // Predicated region
    $region26: #{ffnetwork_forward.1} parent=1 // pred_check
      _
    $region27: #{ffnetwork_forward.1} parent=1 // pred_check_branch
      %50 = sbr.rel (0) target = $region29
    $region28: #{ffnetwork_forward.1} parent=1 // pred_region
      _
    $region29: #{ffnetwork_forward.1} parent=1 // pred_fallthru
      _
    // Predicated region
    $region30: #{ffnetwork_forward.1} parent=1 // pred_check
      _
    $region31: #{ffnetwork_forward.1} parent=1 // pred_check_branch
      %52 = sbr.rel (0) target = $region33
    $region32: #{ffnetwork_forward.1} parent=1 // pred_region
      _
    $region33: #{ffnetwork_forward.1} parent=1 // pred_fallthru
      _
    // Predicated region
    $region34: #{ffnetwork_forward.1} parent=1 // pred_check
      _
    $region35: #{ffnetwork_forward.1} parent=1 // pred_check_branch
      %54 = sbr.rel (0) target = $region37
    $region36: #{ffnetwork_forward.1} parent=1 // pred_region
      _
    $region37: #{ffnetwork_forward.1} parent=1 // pred_fallthru
      _
    // Predicated region
    $region38: #{ffnetwork_forward.1} parent=1 // pred_check
      _
    $region39: #{ffnetwork_forward.1} parent=1 // pred_check_branch
      %56 = sbr.rel (0) target = $region41
    $region40: #{ffnetwork_forward.1} parent=1 // pred_region
      %57 = dma.done [#allocation4], 512
    $region41: #{ffnetwork_forward.1} parent=1 // pred_fallthru
      _
    // Predicated region
    $region42: #{ffnetwork_forward.1} parent=1 // pred_check
      _
    $region43: #{ffnetwork_forward.1} parent=1 // pred_check_branch
      %59 = sbr.rel (0) target = $region45
    $region44: #{ffnetwork_forward.1} parent=1 // pred_region
      %60 = dma.done [#allocation7], 1024
    $region45: #{ffnetwork_forward.1} parent=1 // pred_fallthru
      _
    %v62 = vld [vmem:[%s0] sm:$0x3]
    %v63 = vpack.c.bf16 %v62, %v62
    %v64 = vld [vmem:[#allocation3] sm:$0xf]
    %v65 = vld [vmem:[#allocation3 + $0x4] sm:$0xf]
    %v66 = vld [vmem:[#allocation3 + $0x8] sm:$0xf]
    %v67 = vld [vmem:[#allocation3 + $0xc] sm:$0xf]
    %v68 = vld [vmem:[#allocation3 + $0x10] sm:$0xf]
    %v69 = vld [vmem:[#allocation3 + $0x14] sm:$0xf]
    %v70 = vld [vmem:[#allocation3 + $0x18] sm:$0xf]
    %v71 = vld [vmem:[#allocation3 + $0x1c] sm:$0xf]
    %v72 = vld [vmem:[%s2] sm:$0x1]
    %v74 = vlaneseq
    %v75 = vshrl.u32 %v74, 7
    %v76 = vsub.s32 0, %v75
    %v77 = vrot.slane %v72, %v76
    %v87 = vunpack.c.l.b16 %v64
    %v88 = vunpack.c.l.b16 %v65
    %v89 = vunpack.c.l.b16 %v66
    %v90 = vunpack.c.l.b16 %v67
    %v91 = vunpack.c.l.b16 %v68
    %v92 = vunpack.c.l.b16 %v69
    %v93 = vunpack.c.l.b16 %v70
    %v94 = vunpack.c.l.b16 %v71
    %v95 = vpack.c.b16 %v88, %v87
    %v96 = vpack.c.b16 %v90, %v89
    %v97 = vpack.c.b16 %v92, %v91
    %v98 = vpack.c.b16 %v94, %v93
    %vm103 = vcmask 523264
    %v105 = vsel %vm103, %v63, 0
    %107 = vmatprep.subr.bf16.mxu0 0
    %108 = vmatpush1.bf16.msra.mxu0 %v95
    %109 = vmatprep.subr.bf16.mxu0 0
    %110 = vmatpush1.bf16.msra.mxu0 %v96
    %111 = vmatprep.subr.bf16.mxu0 0
    %112 = vmatpush1.bf16.msra.mxu0 %v97
    %113 = vmatprep.subr.bf16.mxu0 0
    %114 = vmatpush1.bf16.msra.mxu0 %v98
    %115 = vmatprep.subr.bf16.mxu0 0
    %116 = vmatpush1.bf16.msra.mxu0 0
    %117 = vmatprep.subr.bf16.mxu0 0
    %118 = vmatpush1.bf16.msra.mxu0 0
    %119 = vmatprep.subr.bf16.mxu0 0
    %120 = vmatpush1.bf16.msra.mxu0 0
    %121 = vmatprep.subr.bf16.mxu0 0
    %122 = vmatpush1.bf16.msra.mxu0 0
    %123 = vmatprep.subr.bf16.mxu0 0
    %124 = vmatpush1.bf16.msra.mxu0 0
    %125 = vmatprep.subr.bf16.mxu0 0
    %126 = vmatpush1.bf16.msra.mxu0 0
    %127 = vmatprep.subr.bf16.mxu0 0
    %128 = vmatpush1.bf16.msra.mxu0 0
    %129 = vmatprep.subr.bf16.mxu0 0
    %130 = vmatpush1.bf16.msra.mxu0 0
    %131 = vmatprep.subr.bf16.mxu0 0
    %132 = vmatpush1.bf16.msra.mxu0 0
    %133 = vmatprep.subr.bf16.mxu0 0
    %134 = vmatpush1.bf16.msra.mxu0 0
    %135 = vmatprep.subr.bf16.mxu0 0
    %136 = vmatpush1.bf16.msra.mxu0 0
    %137 = vmatprep.subr.bf16.mxu0 0
    %138 = vmatpush1.bf16.msra.mxu0 0
    %139 = vmatprep.mubr.bf16.mxu0 0
    %140 = vmatmul.mubr.bf16.gmra.mrb[0].mxu0 %v105
    %v141 = vpop.f32.mrb[0].mxu0
    %v142 = vadd.f32 %v77, %v141
    %v143 = vpop.f32.mrb[0].mxu0
    %v144 = vpop.f32.mrb[0].mxu0
    %v145 = vpop.f32.mrb[0].mxu0
    %146 = vdwg.mxu0
    %v147 = vpack.c.bf16 %v142, %v142
    %v148 = vmax.bf16 %v147, 0
    %v149 = vld [vmem:[%s3] sm:$0xf]
    %v150 = vld [vmem:[%s3 + $0x4] sm:$0xf]
    %v151 = vld [vmem:[%s3 + $0x8] sm:$0xf]
    %v152 = vld [vmem:[%s3 + $0xc] sm:$0xf]
    %v153 = vld [vmem:[%s3 + $0x10] sm:$0xf]
    %v154 = vld [vmem:[%s3 + $0x14] sm:$0xf]
    %v155 = vld [vmem:[%s3 + $0x18] sm:$0xf]
    %v156 = vld [vmem:[%s3 + $0x1c] sm:$0xf]
    %v157 = vld [vmem:[%s3 + $0x20] sm:$0xf]
    %v158 = vld [vmem:[%s3 + $0x24] sm:$0xf]
    %v159 = vld [vmem:[%s3 + $0x28] sm:$0xf]
    %v160 = vld [vmem:[%s3 + $0x2c] sm:$0xf]
    %v161 = vld [vmem:[%s3 + $0x30] sm:$0xf]
    %v162 = vld [vmem:[%s3 + $0x34] sm:$0xf]
    %v163 = vld [vmem:[%s3 + $0x38] sm:$0xf]
    %v164 = vld [vmem:[%s3 + $0x3c] sm:$0xf]
    %v165 = vld [vmem:[%s4] sm:$0x1]
    %v167 = vlaneseq
    %v168 = vshrl.u32 %v167, 7
    %v169 = vsub.s32 0, %v168
    %v170 = vrot.slane %v165, %v169
    %v188 = vunpack.c.l.b16 %v149
    %v189 = vunpack.c.l.b16 %v150
    %v190 = vunpack.c.l.b16 %v151
    %v191 = vunpack.c.l.b16 %v152
    %v192 = vunpack.c.l.b16 %v153
    %v193 = vunpack.c.l.b16 %v154
    %v194 = vunpack.c.l.b16 %v155
    %v195 = vunpack.c.l.b16 %v156
    %v196 = vunpack.c.l.b16 %v157
    %v197 = vunpack.c.l.b16 %v158
    %v198 = vunpack.c.l.b16 %v159
    %v199 = vunpack.c.l.b16 %v160
    %v200 = vunpack.c.l.b16 %v161
    %v201 = vunpack.c.l.b16 %v162
    %v202 = vunpack.c.l.b16 %v163
    %v203 = vunpack.c.l.b16 %v164
    %v204 = vpack.c.b16 %v189, %v188
    %v205 = vpack.c.b16 %v191, %v190
    %v206 = vpack.c.b16 %v193, %v192
    %v207 = vpack.c.b16 %v195, %v194
    %v208 = vpack.c.b16 %v197, %v196
    %v209 = vpack.c.b16 %v199, %v198
    %v210 = vpack.c.b16 %v201, %v200
    %v211 = vpack.c.b16 %v203, %v202
    %220 = vmatprep.subr.bf16.mxu0 0
    %221 = vmatpush1.bf16.msra.mxu0 %v204
    %222 = vmatprep.subr.bf16.mxu0 0
    %223 = vmatpush1.bf16.msra.mxu0 %v205
    %224 = vmatprep.subr.bf16.mxu0 0
    %225 = vmatpush1.bf16.msra.mxu0 %v206
    %226 = vmatprep.subr.bf16.mxu0 0
    %227 = vmatpush1.bf16.msra.mxu0 %v207
    %228 = vmatprep.subr.bf16.mxu0 0
    %229 = vmatpush1.bf16.msra.mxu0 %v208
    %230 = vmatprep.subr.bf16.mxu0 0
    %231 = vmatpush1.bf16.msra.mxu0 %v209
    %232 = vmatprep.subr.bf16.mxu0 0
    %233 = vmatpush1.bf16.msra.mxu0 %v210
    %234 = vmatprep.subr.bf16.mxu0 0
    %235 = vmatpush1.bf16.msra.mxu0 %v211
    %236 = vmatprep.subr.bf16.mxu0 0
    %237 = vmatpush1.bf16.msra.mxu0 0
    %238 = vmatprep.subr.bf16.mxu0 0
    %239 = vmatpush1.bf16.msra.mxu0 0
    %240 = vmatprep.subr.bf16.mxu0 0
    %241 = vmatpush1.bf16.msra.mxu0 0
    %242 = vmatprep.subr.bf16.mxu0 0
    %243 = vmatpush1.bf16.msra.mxu0 0
    %244 = vmatprep.subr.bf16.mxu0 0
    %245 = vmatpush1.bf16.msra.mxu0 0
    %246 = vmatprep.subr.bf16.mxu0 0
    %247 = vmatpush1.bf16.msra.mxu0 0
    %248 = vmatprep.subr.bf16.mxu0 0
    %249 = vmatpush1.bf16.msra.mxu0 0
    %250 = vmatprep.subr.bf16.mxu0 0
    %251 = vmatpush1.bf16.msra.mxu0 0
    %252 = vmatprep.mubr.bf16.mxu0 0
    %253 = vmatmul.mubr.bf16.gmra.mrb[0].mxu0 %v148
    %v254 = vpop.f32.mrb[0].mxu0
    %v255 = vadd.f32 %v170, %v254
    %v256 = vpop.f32.mrb[0].mxu0
    %v257 = vpop.f32.mrb[0].mxu0
    %v258 = vpop.f32.mrb[0].mxu0
    %259 = vdwg.mxu0
    %v260 = vpack.c.bf16 %v255, %v255
    %v261 = vmax.bf16 %v260, 0
    %v262 = vld [vmem:[#allocation6] sm:$0xf]
    %v263 = vld [vmem:[#allocation6 + $0x4] sm:$0xf]
    %v264 = vld [vmem:[#allocation6 + $0x8] sm:$0xf]
    %v265 = vld [vmem:[#allocation6 + $0xc] sm:$0xf]
    %v266 = vld [vmem:[#allocation6 + $0x10] sm:$0xf]
    %v267 = vld [vmem:[#allocation6 + $0x14] sm:$0xf]
    %v268 = vld [vmem:[#allocation6 + $0x18] sm:$0xf]
    %v269 = vld [vmem:[#allocation6 + $0x1c] sm:$0xf]
    %v270 = vld [vmem:[#allocation6 + $0x20] sm:$0xf]
    %v271 = vld [vmem:[#allocation6 + $0x24] sm:$0xf]
    %v272 = vld [vmem:[#allocation6 + $0x28] sm:$0xf]
    %v273 = vld [vmem:[#allocation6 + $0x2c] sm:$0xf]
    %v274 = vld [vmem:[#allocation6 + $0x30] sm:$0xf]
    %v275 = vld [vmem:[#allocation6 + $0x34] sm:$0xf]
    %v276 = vld [vmem:[#allocation6 + $0x38] sm:$0xf]
    %v277 = vld [vmem:[#allocation6 + $0x3c] sm:$0xf]
    %v278 = vld [vmem:[%s6] sm:$0x1]
    %v280 = vlaneseq
    %v281 = vshrl.u32 %v280, 7
    %v282 = vsub.s32 0, %v281
    %v283 = vrot.slane %v278, %v282
    %v301 = vunpack.c.l.b16 %v262
    %v302 = vunpack.c.l.b16 %v263
    %v303 = vunpack.c.l.b16 %v264
    %v304 = vunpack.c.l.b16 %v265
    %v305 = vunpack.c.l.b16 %v266
    %v306 = vunpack.c.l.b16 %v267
    %v307 = vunpack.c.l.b16 %v268
    %v308 = vunpack.c.l.b16 %v269
    %v309 = vunpack.c.l.b16 %v270
    %v310 = vunpack.c.l.b16 %v271
    %v311 = vunpack.c.l.b16 %v272
    %v312 = vunpack.c.l.b16 %v273
    %v313 = vunpack.c.l.b16 %v274
    %v314 = vunpack.c.l.b16 %v275
    %v315 = vunpack.c.l.b16 %v276
    %v316 = vunpack.c.l.b16 %v277
    %v317 = vpack.c.b16 %v302, %v301
    %v318 = vpack.c.b16 %v304, %v303
    %v319 = vpack.c.b16 %v306, %v305
    %v320 = vpack.c.b16 %v308, %v307
    %v321 = vpack.c.b16 %v310, %v309
    %v322 = vpack.c.b16 %v312, %v311
    %v323 = vpack.c.b16 %v314, %v313
    %v324 = vpack.c.b16 %v316, %v315
    %333 = vmatprep.subr.bf16.mxu0 0
    %334 = vmatpush1.bf16.msra.mxu0 %v317
    %335 = vmatprep.subr.bf16.mxu0 0
    %336 = vmatpush1.bf16.msra.mxu0 %v318
    %337 = vmatprep.subr.bf16.mxu0 0
    %338 = vmatpush1.bf16.msra.mxu0 %v319
    %339 = vmatprep.subr.bf16.mxu0 0
    %340 = vmatpush1.bf16.msra.mxu0 %v320
    %341 = vmatprep.subr.bf16.mxu0 0
    %342 = vmatpush1.bf16.msra.mxu0 %v321
    %343 = vmatprep.subr.bf16.mxu0 0
    %344 = vmatpush1.bf16.msra.mxu0 %v322
    %345 = vmatprep.subr.bf16.mxu0 0
    %346 = vmatpush1.bf16.msra.mxu0 %v323
    %347 = vmatprep.subr.bf16.mxu0 0
    %348 = vmatpush1.bf16.msra.mxu0 %v324
    %349 = vmatprep.subr.bf16.mxu0 0
    %350 = vmatpush1.bf16.msra.mxu0 0
    %351 = vmatprep.subr.bf16.mxu0 0
    %352 = vmatpush1.bf16.msra.mxu0 0
    %353 = vmatprep.subr.bf16.mxu0 0
    %354 = vmatpush1.bf16.msra.mxu0 0
    %355 = vmatprep.subr.bf16.mxu0 0
    %356 = vmatpush1.bf16.msra.mxu0 0
    %357 = vmatprep.subr.bf16.mxu0 0
    %358 = vmatpush1.bf16.msra.mxu0 0
    %359 = vmatprep.subr.bf16.mxu0 0
    %360 = vmatpush1.bf16.msra.mxu0 0
    %361 = vmatprep.subr.bf16.mxu0 0
    %362 = vmatpush1.bf16.msra.mxu0 0
    %363 = vmatprep.subr.bf16.mxu0 0
    %364 = vmatpush1.bf16.msra.mxu0 0
    %365 = vmatprep.mubr.bf16.mxu0 0
    %366 = vmatmul.mubr.bf16.gmra.mrb[0].mxu0 %v261
    %v367 = vpop.f32.mrb[0].mxu0
    %v368 = vadd.f32 %v283, %v367
    %v369 = vpop.f32.mrb[0].mxu0
    %v370 = vpop.f32.mrb[0].mxu0
    %v371 = vpop.f32.mrb[0].mxu0
    %372 = vdwg.mxu0
    %v373 = vpack.c.bf16 %v368, %v368
    %v374 = vmax.bf16 %v373, 0
    %v375 = vld [vmem:[%s7] sm:$0xf]
    %v376 = vld [vmem:[%s7 + $0x4] sm:$0xf]
    %v377 = vld [vmem:[%s7 + $0x8] sm:$0xf]
    %v378 = vld [vmem:[%s7 + $0xc] sm:$0xf]
    %v379 = vld [vmem:[%s7 + $0x10] sm:$0xf]
    %v380 = vld [vmem:[%s7 + $0x14] sm:$0xf]
    %v381 = vld [vmem:[%s7 + $0x18] sm:$0xf]
    %v382 = vld [vmem:[%s7 + $0x1c] sm:$0xf]
    %v383 = vld [vmem:[%s7 + $0x20] sm:$0xf]
    %v384 = vld [vmem:[%s7 + $0x24] sm:$0xf]
    %v385 = vld [vmem:[%s7 + $0x28] sm:$0xf]
    %v386 = vld [vmem:[%s7 + $0x2c] sm:$0xf]
    %v387 = vld [vmem:[%s7 + $0x30] sm:$0xf]
    %v388 = vld [vmem:[%s7 + $0x34] sm:$0xf]
    %v389 = vld [vmem:[%s7 + $0x38] sm:$0xf]
    %v390 = vld [vmem:[%s7 + $0x3c] sm:$0xf]
    %v391 = vld [vmem:[%s8] sm:$0x1]
    %v393 = vlaneseq
    %v394 = vshrl.u32 %v393, 7
    %v395 = vsub.s32 0, %v394
    %v396 = vrot.slane %v391, %v395
    %v414 = vunpack.c.l.b16 %v375
    %v415 = vunpack.c.l.b16 %v376
    %v416 = vunpack.c.l.b16 %v377
    %v417 = vunpack.c.l.b16 %v378
    %v418 = vunpack.c.l.b16 %v379
    %v419 = vunpack.c.l.b16 %v380
    %v420 = vunpack.c.l.b16 %v381
    %v421 = vunpack.c.l.b16 %v382
    %v422 = vunpack.c.l.b16 %v383
    %v423 = vunpack.c.l.b16 %v384
    %v424 = vunpack.c.l.b16 %v385
    %v425 = vunpack.c.l.b16 %v386
    %v426 = vunpack.c.l.b16 %v387
    %v427 = vunpack.c.l.b16 %v388
    %v428 = vunpack.c.l.b16 %v389
    %v429 = vunpack.c.l.b16 %v390
    %v430 = vpack.c.b16 %v415, %v414
    %v431 = vpack.c.b16 %v417, %v416
    %v432 = vpack.c.b16 %v419, %v418
    %v433 = vpack.c.b16 %v421, %v420
    %v434 = vpack.c.b16 %v423, %v422
    %v435 = vpack.c.b16 %v425, %v424
    %v436 = vpack.c.b16 %v427, %v426
    %v437 = vpack.c.b16 %v429, %v428
    %446 = vmatprep.subr.bf16.mxu0 0
    %447 = vmatpush1.bf16.msra.mxu0 %v430
    %448 = vmatprep.subr.bf16.mxu0 0
    %449 = vmatpush1.bf16.msra.mxu0 %v431
    %450 = vmatprep.subr.bf16.mxu0 0
    %451 = vmatpush1.bf16.msra.mxu0 %v432
    %452 = vmatprep.subr.bf16.mxu0 0
    %453 = vmatpush1.bf16.msra.mxu0 %v433
    %454 = vmatprep.subr.bf16.mxu0 0
    %455 = vmatpush1.bf16.msra.mxu0 %v434
    %456 = vmatprep.subr.bf16.mxu0 0
    %457 = vmatpush1.bf16.msra.mxu0 %v435
    %458 = vmatprep.subr.bf16.mxu0 0
    %459 = vmatpush1.bf16.msra.mxu0 %v436
    %460 = vmatprep.subr.bf16.mxu0 0
    %461 = vmatpush1.bf16.msra.mxu0 %v437
    %462 = vmatprep.subr.bf16.mxu0 0
    %463 = vmatpush1.bf16.msra.mxu0 0
    %464 = vmatprep.subr.bf16.mxu0 0
    %465 = vmatpush1.bf16.msra.mxu0 0
    %466 = vmatprep.subr.bf16.mxu0 0
    %467 = vmatpush1.bf16.msra.mxu0 0
    %468 = vmatprep.subr.bf16.mxu0 0
    %469 = vmatpush1.bf16.msra.mxu0 0
    %470 = vmatprep.subr.bf16.mxu0 0
    %471 = vmatpush1.bf16.msra.mxu0 0
    %472 = vmatprep.subr.bf16.mxu0 0
    %473 = vmatpush1.bf16.msra.mxu0 0
    %474 = vmatprep.subr.bf16.mxu0 0
    %475 = vmatpush1.bf16.msra.mxu0 0
    %476 = vmatprep.subr.bf16.mxu0 0
    %477 = vmatpush1.bf16.msra.mxu0 0
    %478 = vmatprep.mubr.bf16.mxu0 0
    %479 = vmatmul.mubr.bf16.gmra.mrb[0].mxu0 %v374
    %v480 = vpop.f32.mrb[0].mxu0
    %v481 = vadd.f32 %v396, %v480
    %v482 = vpop.f32.mrb[0].mxu0
    %v483 = vpop.f32.mrb[0].mxu0
    %v484 = vpop.f32.mrb[0].mxu0
    %485 = vdwg.mxu0
    %vm486 = vcmask 58368
    %487 = vst.msk [vmem:[#allocation8] sm:$0x3] %vm486, %v481
    // Predicated region
    $region46: #{ffnetwork_forward.1} parent=1 // pred_check
      _
    $region47: #{ffnetwork_forward.1} parent=1 // pred_check_branch
      %489 = sbr.rel (0) target = $region49
    $region48: #{ffnetwork_forward.1} parent=1 // pred_region
      %s491 = ssub.s32 32, 32
      %492 = vsyncadd [#allocation5], %s491
      %s494 = sshll.u32 [#allocation8], 4
      %s495 = int_to_ptr.vmem [resolvable:$true] %s494
      %497 = dma.vmem_to_hbm [thread:$0]  %s495, 32, %s9, [#allocation5]
    $region49: #{ffnetwork_forward.1} parent=1 // pred_fallthru
      _
    // Predicated region
    $region50: #{ffnetwork_forward.1} parent=1 // pred_check
      _
    $region51: #{ffnetwork_forward.1} parent=1 // pred_check_branch
      %499 = sbr.rel (0) target = $region53
    $region52: #{ffnetwork_forward.1} parent=1 // pred_region
      %500 = dma.done [#allocation5], 32
    $region53: #{ffnetwork_forward.1} parent=1 // pred_fallthru
      _
    %501 = vsyncpa [#allocation4], 1
    %502 = vsyncpa [#allocation7], 1
    %503 = vsyncpa [#allocation5], 1

</llo_original>
